<compile_context>
chip_gen: v7x
topology: tpu7x:2x2x1
jax: 0.10.0
libtpu: 0.0.40
codegen_flags: <defaults>
</compile_context>

<pallas_src>
import jax
import jax.numpy as jnp
from jax.experimental import pallas as pl
from jax.experimental.pallas import tpu as pltpu


def _gating_kernel(x1_ref, x2_ref, w1_ref, w2_ref, b_ref, out_ref):
    """One (TM, Dp) row tile.

    gate = sigmoid(x1 @ W1 + x2 @ W2 + (b1 + b2))   (bf16 MXU, f32 accumulate)
    out  = x2 + gate * (x1 - x2)                    (f32 VPU; == gate*x1+(1-gate)*x2)
    """
    x1 = x1_ref[...]                                   # (TM, Dp) f32
    x2 = x2_ref[...]                                   # (TM, Dp) f32

    z = jnp.dot(x1.astype(jnp.bfloat16), w1_ref[...],
                preferred_element_type=jnp.float32)
    z += jnp.dot(x2.astype(jnp.bfloat16), w2_ref[...],
                 preferred_element_type=jnp.float32)
    z += b_ref[...]                                    # (1, Dp) broadcast, fused bias

    gate = jax.nn.sigmoid(z)                           # EUP transcendental
    out_ref[...] = (x2 + gate * (x1 - x2)).astype(out_ref.dtype)


def _fold_factor(D):
    """Fold rows into lanes when the feature dim underfills the 128-lane vreg."""
    if D < 128 and 128 % D == 0:
        return 128 // D
    return 1


def prepare_gating_params(w1, b1, w2, b2):
    """One-time parameter prep (call outside the hot path).

    Weights are stored as (D_in, D_out) == transpose of PyTorch's Linear.weight.
    Returns (w1p, w2p, bp): bf16 (possibly block-diagonal, lane-dense) weights
    and the fused f32 bias in the same folded layout.
    """
    D = w1.shape[0]
    f = _fold_factor(D)
    b = (b1 + b2).astype(jnp.float32)
    if f > 1:
        eye = jnp.eye(f, dtype=jnp.float32)
        w1p = jnp.kron(eye, w1.astype(jnp.float32)).astype(jnp.bfloat16)
        w2p = jnp.kron(eye, w2.astype(jnp.float32)).astype(jnp.bfloat16)
        bp = jnp.tile(b, f).reshape(1, f * D)
    else:
        w1p = w1.astype(jnp.bfloat16)
        w2p = w2.astype(jnp.bfloat16)
        bp = b.reshape(1, D)
    return w1p, w2p, bp


def _vmem_budget_and_limit():
    """(budget for tiling math, vmem_limit_bytes) chosen per TPU generation."""
    try:
        cap = int(getattr(pltpu.get_tpu_info(), "vmem_capacity_bytes", 0))
    except Exception:
        cap = 0
    if cap >= 96 * 1024 * 1024:                 # v5e / v6e: 128 MiB physical VMEM
        return 80 * 1024 * 1024, 100 * 1024 * 1024
    return 40 * 1024 * 1024, 48 * 1024 * 1024   # v7x (64 MiB) or unknown -> conservative


def _choose_tile_rows(Mf, Dp, budget, weight_buffers):
    """Largest row tile that keeps streamed buffers + temporaries + resident
    weights inside the VMEM budget, while keeping the grid >= ~4 programs."""
    # Resident footprint: W1, W2 bf16 (x weight_buffers) + f32 bias (x2, tiny).
    resident = weight_buffers * 2 * Dp * Dp * 2 + 2 * Dp * 4
    # Streamed: x1/x2/out f32 double-buffered, plus ~5 live (TM, Dp) f32
    # temporaries the body materializes (bf16 casts, z, gate, x1-x2, cast result).
    per_row = (3 * 2 + 5) * Dp * 4
    avail = budget - resident
    if avail < 8 * per_row:
        # TODO(synk): tile W1/W2 along the output-feature dim (2-D grid) once
        # the resident weights no longer fit VMEM at very large D.
        raise ValueError(
            f"resident gate weights ({resident} bytes) do not fit the "
            f"{budget}-byte VMEM budget; output-feature tiling is required.")
    tm = (avail // per_row) // 8 * 8
    # Keep >= ~4 (>=2) grid programs when M allows it: shards the row axis over
    # both v7x TensorCores and gives the DMA pipeline something to overlap.
    if Mf >= 32:
        tm = min(tm, max(8, (Mf // 4) // 8 * 8))
    elif Mf >= 16:
        tm = min(tm, max(8, (Mf // 2) // 8 * 8))
    tm = max(8, tm)
    return Mf if Mf <= tm else tm


def gating_network(tensor1, tensor2, w1p, w2p, bp):
    """tensor1/tensor2: (B, S, D) f32.  w1p/w2p/bp from prepare_gating_params."""
    B, S, D = tensor1.shape
    Dp = w1p.shape[0]            # lane-dense (folded) feature dim = fold * D
    fold = Dp // D
    M = B * S

    x1 = tensor1.reshape(M, D)
    x2 = tensor2.reshape(M, D)
    pad = (-M) % fold
    if pad:                      # only when B*S is not a multiple of the fold
        x1 = jnp.pad(x1, ((0, pad), (0, 0)))
        x2 = jnp.pad(x2, ((0, pad), (0, 0)))
    Mf = (M + pad) // fold
    x1 = x1.reshape(Mf, Dp)      # free contiguous view: rows folded into lanes
    x2 = x2.reshape(Mf, Dp)

    budget, vmem_limit = _vmem_budget_and_limit()
    # Resident blocks never change (constant index_map); for large weights the
    # default double-buffer copy is wasted VMEM, so request single buffering.
    single_buffer_weights = Dp >= 1024
    TM = _choose_tile_rows(Mf, Dp, budget, 1 if single_buffer_weights else 2)
    grid = (pl.cdiv(Mf, TM),)

    # Streamed, double-buffered row tiles.  (If per-step bytes stay tiny at
    # small D, pipeline_mode=pl.Buffered(3) here is worth a sweep.)
    row_spec = pl.BlockSpec((TM, Dp), lambda i: (i, 0))

    def _resident(shape):        # VMEM-resident across the whole grid
        if single_buffer_weights:
            return pl.BlockSpec(shape, lambda i: (0, 0),
                                pipeline_mode=pl.Buffered(1))
        return pl.BlockSpec(shape, lambda i: (0, 0))

    out = pl.pallas_call(
        _gating_kernel,
        out_shape=jax.ShapeDtypeStruct((Mf, Dp), tensor1.dtype),
        grid=grid,
        in_specs=[
            row_spec,                 # x1 (folded, lane-dense)
            row_spec,                 # x2 (folded, lane-dense)
            _resident((Dp, Dp)),      # W1 (bf16, block-diagonal if folded)
            _resident((Dp, Dp)),      # W2 (bf16, block-diagonal if folded)
            _resident((1, Dp)),       # fused bias (f32, tiled if folded)
        ],
        out_specs=pl.BlockSpec((TM, Dp), lambda i: (i, 0)),
        compiler_params=pltpu.CompilerParams(
            dimension_semantics=("parallel",),   # row axis -> both v7x TCs
            vmem_limit_bytes=vmem_limit,
        ),
    )(x1, x2, w1p, w2p, bp)

    out = out.reshape(Mf * fold, D)
    if pad:
        out = out[:M]
    return out.reshape(B, S, D)


def init_params(key, input_dim):
    # Deterministic init mimicking nn.Linear's uniform(-1/sqrt(D), 1/sqrt(D)).
    k1, k2, k3, k4 = jax.random.split(key, 4)
    bound = 1.0 / float(input_dim) ** 0.5
    # Stored as (D_in, D_out) == transpose of PyTorch's (out, in) weight.
    w1 = jax.random.uniform(k1, (input_dim, input_dim), jnp.float32, -bound, bound)
    b1 = jax.random.uniform(k2, (input_dim,), jnp.float32, -bound, bound)
    w2 = jax.random.uniform(k3, (input_dim, input_dim), jnp.float32, -bound, bound)
    b2 = jax.random.uniform(k4, (input_dim,), jnp.float32, -bound, bound)
    return w1, b1, w2, b2


if __name__ == "__main__":
    B, S, D = 2, 8, 32  # batch, seq, feature
    key = jax.random.PRNGKey(0)
    kx1, kx2, kp = jax.random.split(key, 3)

    tensor1 = jax.random.normal(kx1, (B, S, D), jnp.float32)
    tensor2 = jax.random.normal(kx2, (B, S, D), jnp.float32)
    w1, b1, w2, b2 = init_params(kp, D)

    # One-time parameter prep, hoisted out of the hot path.
    w1p, w2p, bp = prepare_gating_params(w1, b1, w2, b2)

    out = gating_network(tensor1, tensor2, w1p, w2p, bp)
    jax.block_until_ready(out)

    x1f = tensor1.reshape(-1, D)
    x2f = tensor2.reshape(-1, D)

    # Reference 1 (tight): same bf16-input/weight, f32-accumulate path as the kernel.
    z_bf = (x1f.astype(jnp.bfloat16).astype(jnp.float32)
            @ w1.astype(jnp.bfloat16).astype(jnp.float32)
            + x2f.astype(jnp.bfloat16).astype(jnp.float32)
            @ w2.astype(jnp.bfloat16).astype(jnp.float32)
            + b1 + b2)
    gate_bf = jax.nn.sigmoid(z_bf).reshape(B, S, D)
    ref_bf = tensor2 + gate_bf * (tensor1 - tensor2)
    assert jnp.allclose(out, ref_bf, atol=1e-4, rtol=1e-4), "mismatch vs bf16-path ref"

    # Reference 2 (loose): original full-f32 PyTorch forward semantics.
    gate_f32 = jax.nn.sigmoid(x1f @ w1 + b1 + x2f @ w2 + b2).reshape(B, S, D)
    ref_f32 = gate_f32 * tensor1 + (1.0 - gate_f32) * tensor2
    assert jnp.allclose(out, ref_f32, atol=3e-2, rtol=3e-2), "mismatch vs f32 ref"

    print("KERNEL_OK")
</pallas_src>

<mosaic_0001>
module attributes {stable_mosaic.version = 11 : i64} {
  func.func @_gating_kernel(%arg0: i32, %arg1: memref<4x128xf32, #tpu.memory_space<vmem>>, %arg2: memref<4x128xf32, #tpu.memory_space<vmem>>, %arg3: memref<128x128xbf16, #tpu.memory_space<vmem>>, %arg4: memref<128x128xbf16, #tpu.memory_space<vmem>>, %arg5: memref<1x128xf32, #tpu.memory_space<vmem>>, %arg6: memref<4x128xf32, #tpu.memory_space<vmem>>) attributes {dimension_semantics = [#tpu.dimension_semantics<parallel>], iteration_bounds = array<i64: 1>, scalar_prefetch = 0 : i64, scratch_operands = 0 : i64, tpu.core_type = #tpu.core_type<tc>, window_params = [{transform_indices = @transform_0, window_bounds = array<i64: 4, 128>}, {transform_indices = @transform_1, window_bounds = array<i64: 4, 128>}, {pipeline_mode = #tpu.pipeline_mode<synchronous>, transform_indices = @transform_2, window_bounds = array<i64: 128, 128>}, {pipeline_mode = #tpu.pipeline_mode<synchronous>, transform_indices = @transform_3, window_bounds = array<i64: 128, 128>}, {pipeline_mode = #tpu.pipeline_mode<synchronous>, transform_indices = @transform_4, window_bounds = array<i64: 1, 128>}, {transform_indices = @transform_5, window_bounds = array<i64: 4, 128>}]} {
    %c0 = arith.constant 0 : index
    %c0_0 = arith.constant 0 : index
    %0 = vector.load %arg1[%c0, %c0_0] : memref<4x128xf32, #tpu.memory_space<vmem>>, vector<4x128xf32>
    %c0_1 = arith.constant 0 : index
    %c0_2 = arith.constant 0 : index
    %1 = vector.load %arg2[%c0_1, %c0_2] : memref<4x128xf32, #tpu.memory_space<vmem>>, vector<4x128xf32>
    %2 = arith.truncf %0 : vector<4x128xf32> to vector<4x128xbf16>
    %c0_3 = arith.constant 0 : index
    %c0_4 = arith.constant 0 : index
    %3 = vector.load %arg3[%c0_3, %c0_4] : memref<128x128xbf16, #tpu.memory_space<vmem>>, vector<128x128xbf16>
    %cst = arith.constant dense<0.000000e+00> : vector<4x128xf32>
    %4 = tpu.matmul %2, %3, %cst {dimension_numbers = #tpu.dot_dimension_numbers<[1], [0], [0], [1], [0, 0, 1, 1], [], []>} : vector<4x128xbf16>, vector<128x128xbf16>, vector<4x128xf32> -> vector<4x128xf32>
    %5 = arith.truncf %1 : vector<4x128xf32> to vector<4x128xbf16>
    %c0_5 = arith.constant 0 : index
    %c0_6 = arith.constant 0 : index
    %6 = vector.load %arg4[%c0_5, %c0_6] : memref<128x128xbf16, #tpu.memory_space<vmem>>, vector<128x128xbf16>
    %cst_7 = arith.constant dense<0.000000e+00> : vector<4x128xf32>
    %7 = tpu.matmul %5, %6, %cst_7 {dimension_numbers = #tpu.dot_dimension_numbers<[1], [0], [0], [1], [0, 0, 1, 1], [], []>} : vector<4x128xbf16>, vector<128x128xbf16>, vector<4x128xf32> -> vector<4x128xf32>
    %8 = arith.addf %4, %7 : vector<4x128xf32>
    %c0_8 = arith.constant 0 : index
    %c0_9 = arith.constant 0 : index
    %9 = vector.load %arg5[%c0_8, %c0_9] : memref<1x128xf32, #tpu.memory_space<vmem>>, vector<1x128xf32>
    %10 = vector.broadcast %9 : vector<1x128xf32> to vector<4x128xf32>
    %11 = arith.addf %8, %10 : vector<4x128xf32>
    %12 = arith.negf %11 : vector<4x128xf32>
    %13 = math.exp %12 : vector<4x128xf32>
    %cst_10 = arith.constant 1.000000e+00 : f32
    %14 = vector.broadcast %cst_10 : f32 to vector<4x128xf32>
    %15 = arith.addf %14, %13 : vector<4x128xf32>
    %16 = arith.divf %14, %15 : vector<4x128xf32>
    %17 = arith.subf %0, %1 : vector<4x128xf32>
    %18 = arith.mulf %16, %17 : vector<4x128xf32>
    %19 = arith.addf %1, %18 : vector<4x128xf32>
    %c0_11 = arith.constant 0 : index
    %c0_12 = arith.constant 0 : index
    %20 = vector.load %arg6[%c0_11, %c0_12] : memref<4x128xf32, #tpu.memory_space<vmem>>, vector<4x128xf32>
    tpu.vector_store %arg6[%c0_11, %c0_12], %19 {strides = array<i32>} : memref<4x128xf32, #tpu.memory_space<vmem>>, vector<4x128xf32>,
    return
  }
  func.func @transform_0(%arg0: i32) -> (i32, i32) {
    %c0_i32 = arith.constant 0 : i32
    %c0_i32_0 = arith.constant 0 : i32
    return %arg0, %c0_i32 : i32, i32
  }
  func.func @transform_1(%arg0: i32) -> (i32, i32) {
    %c0_i32 = arith.constant 0 : i32
    %c0_i32_0 = arith.constant 0 : i32
    return %arg0, %c0_i32 : i32, i32
  }
  func.func @transform_2(%arg0: i32) -> (i32, i32) {
    %c0_i32 = arith.constant 0 : i32
    %c0_i32_0 = arith.constant 0 : i32
    %c0_i32_1 = arith.constant 0 : i32
    return %c0_i32, %c0_i32_0 : i32, i32
  }
  func.func @transform_3(%arg0: i32) -> (i32, i32) {
    %c0_i32 = arith.constant 0 : i32
    %c0_i32_0 = arith.constant 0 : i32
    %c0_i32_1 = arith.constant 0 : i32
    return %c0_i32, %c0_i32_0 : i32, i32
  }
  func.func @transform_4(%arg0: i32) -> (i32, i32) {
    %c0_i32 = arith.constant 0 : i32
    %c0_i32_0 = arith.constant 0 : i32
    %c0_i32_1 = arith.constant 0 : i32
    return %c0_i32, %c0_i32_0 : i32, i32
  }
  func.func @transform_5(%arg0: i32) -> (i32, i32) {
    %c0_i32 = arith.constant 0 : i32
    %c0_i32_0 = arith.constant 0 : i32
    return %arg0, %c0_i32 : i32, i32
  }
}

</mosaic_0001>

<llo_original>
// kernel: tpu_custom_call.1
$region0: #{tpu_custom_call.1}
  #allocation0 [shape = 'u32[]', space=smem, size = 0x4, offset = 0x4, fixed_abs, tag = 'smem constant byte address 0x4 - core index']
  #allocation1 [shape = 'u32[144,128]{1,0:T(1,128)}', space=vmem, size = 0x12000, scoped, tag = 'internal scratch']
  %s0 = inlined_call_operand.hbm [shape: f32[4,128], index: 0, kind: input, shape index: {}]
  %s1 = inlined_call_operand.hbm [shape: f32[4,128], index: 1, kind: input, shape index: {}]
  %s2 = inlined_call_operand.hbm [shape: bf16[128,128], index: 2, kind: input, shape index: {}]
  %s3 = inlined_call_operand.hbm [shape: bf16[128,128], index: 3, kind: input, shape index: {}]
  %s4 = inlined_call_operand.vmem [shape: f32[1,128], index: 4, kind: input, shape index: {}]
  %s5 = inlined_call_operand.hbm [shape: f32[4,128], index: 5, kind: output, shape index: {}]
  %s6 = sld [smem:[#allocation0]]
  $region46: #{tpu_custom_call.1} parent=0
    _
  %s8 = ssub.s32 1, %s6
  %s9 = scalar_select 0, %s8, %s6
  $region1: #{tpu_custom_call.1} parent=0
    #allocation2 [shape = 'u8[2048]{0}', space=vmem, size = 0x800, scoped, tag = 'input window, operand 0, single buffered']
    #allocation3 [shape = 's32[1]{0}', space=sflag, size = 0x4, scoped, tag = 'scoped memory for tpu_custom_call.1']
    #allocation4 [shape = 's32[1]{0}', space=sflag, size = 0x4, scoped, tag = 'scoped memory for tpu_custom_call.1']
    #allocation5 [shape = 'u8[2048]{0}', space=vmem, size = 0x800, scoped, tag = 'input window, operand 1, single buffered']
    #allocation6 [shape = 's32[1]{0}', space=sflag, size = 0x4, scoped, tag = 'scoped memory for tpu_custom_call.1']
    #allocation7 [shape = 'u8[32768]{0}', space=vmem, size = 0x8000, scoped, tag = 'input window, operand 2, single buffered']
    #allocation8 [shape = 'u8[32768]{0}', space=vmem, size = 0x8000, scoped, tag = 'input window, operand 3, single buffered']
    #allocation9 [shape = 's32[1]{0}', space=sflag, size = 0x4, scoped, tag = 'scoped memory for tpu_custom_call.1']
    #allocation10 [shape = 'u8[2048]{0}', space=vmem, size = 0x800, scoped, tag = 'output window, operand 0, single buffered']
    %10 = vsyncpa [#allocation3], 0
    %11 = vsyncpa [#allocation6], 0
    %12 = vsyncpa [#allocation9], 0
    %13 = vsyncpa [#allocation4], 0
    // Predicated region
    $region2: #{tpu_custom_call.1} parent=1 // pred_check
      _
    $region3: #{tpu_custom_call.1} parent=1 // pred_check_branch
      %15 = sbr.rel (0) target = $region5
    $region4: #{tpu_custom_call.1} parent=1 // pred_region
      %s17 = ssub.s32 64, 64
      %18 = vsyncadd [#allocation3], %s17
      %s20 = sshll.u32 [#allocation2], 4
      %s21 = int_to_ptr.vmem [resolvable:$true] %s20
      %23 = dma.hbm_to_vmem [thread:$0]  %s0, 64, %s21, [#allocation3]
    $region5: #{tpu_custom_call.1} parent=1 // pred_fallthru
      _
    // Predicated region
    $region6: #{tpu_custom_call.1} parent=1 // pred_check
      _
    $region7: #{tpu_custom_call.1} parent=1 // pred_check_branch
      %25 = sbr.rel (0) target = $region9
    $region8: #{tpu_custom_call.1} parent=1 // pred_region
      %s27 = ssub.s32 64, 64
      %28 = vsyncadd [#allocation6], %s27
      %s30 = sshll.u32 [#allocation5], 4
      %s31 = int_to_ptr.vmem [resolvable:$true] %s30
      %33 = dma.hbm_to_vmem [thread:$0]  %s1, 64, %s31, [#allocation6]
    $region9: #{tpu_custom_call.1} parent=1 // pred_fallthru
      _
    // Predicated region
    $region10: #{tpu_custom_call.1} parent=1 // pred_check
      _
    $region11: #{tpu_custom_call.1} parent=1 // pred_check_branch
      %35 = sbr.rel (0) target = $region13
    $region12: #{tpu_custom_call.1} parent=1 // pred_region
      %s37 = ssub.s32 1024, 1024
      %38 = vsyncadd [#allocation6], %s37
      %s39 = sshll.u32 [#allocation7], 4
      %s40 = int_to_ptr.vmem [resolvable:$true] %s39
      %45 = dma.hbm_to_vmem [thread:$0]  %s2, 1024, %s40, [#allocation6], 64, 64, 4
    $region13: #{tpu_custom_call.1} parent=1 // pred_fallthru
      _
    // Predicated region
    $region14: #{tpu_custom_call.1} parent=1 // pred_check
      _
    $region15: #{tpu_custom_call.1} parent=1 // pred_check_branch
      %47 = sbr.rel (0) target = $region17
    $region16: #{tpu_custom_call.1} parent=1 // pred_region
      %s49 = ssub.s32 1024, 1024
      %50 = vsyncadd [#allocation9], %s49
      %s51 = sshll.u32 [#allocation8], 4
      %s52 = int_to_ptr.vmem [resolvable:$true] %s51
      %57 = dma.hbm_to_vmem [thread:$0]  %s3, 1024, %s52, [#allocation9], 64, 64, 4
    $region17: #{tpu_custom_call.1} parent=1 // pred_fallthru
      _
    // Predicated region
    $region18: #{tpu_custom_call.1} parent=1 // pred_check
      _
    $region19: #{tpu_custom_call.1} parent=1 // pred_check_branch
      %59 = sbr.rel (0) target = $region21
    $region20: #{tpu_custom_call.1} parent=1 // pred_region
      _
    $region21: #{tpu_custom_call.1} parent=1 // pred_fallthru
      _
    // Predicated region
    $region22: #{tpu_custom_call.1} parent=1 // pred_check
      _
    $region23: #{tpu_custom_call.1} parent=1 // pred_check_branch
      %61 = sbr.rel (0) target = $region25
    $region24: #{tpu_custom_call.1} parent=1 // pred_region
      %62 = dma.done [#allocation3], 64
    $region25: #{tpu_custom_call.1} parent=1 // pred_fallthru
      _
    // Predicated region
    $region26: #{tpu_custom_call.1} parent=1 // pred_check
      _
    $region27: #{tpu_custom_call.1} parent=1 // pred_check_branch
      %64 = sbr.rel (0) target = $region29
    $region28: #{tpu_custom_call.1} parent=1 // pred_region
      %65 = dma.done [#allocation6], 64
    $region29: #{tpu_custom_call.1} parent=1 // pred_fallthru
      _
    // Predicated region
    $region30: #{tpu_custom_call.1} parent=1 // pred_check
      _
    $region31: #{tpu_custom_call.1} parent=1 // pred_check_branch
      %67 = sbr.rel (0) target = $region33
    $region32: #{tpu_custom_call.1} parent=1 // pred_region
      %68 = dma.done [#allocation6], 1024
    $region33: #{tpu_custom_call.1} parent=1 // pred_fallthru
      _
    // Predicated region
    $region34: #{tpu_custom_call.1} parent=1 // pred_check
      _
    $region35: #{tpu_custom_call.1} parent=1 // pred_check_branch
      %70 = sbr.rel (0) target = $region37
    $region36: #{tpu_custom_call.1} parent=1 // pred_region
      %71 = dma.done [#allocation9], 1024
    $region37: #{tpu_custom_call.1} parent=1 // pred_fallthru
      _
    %v73 = vld [vmem:[#allocation2] sm:$0xf]
    %v74 = vld [vmem:[#allocation5] sm:$0xf]
    %v75 = vpack.c.bf16 %v73, %v73
    %v76 = vld [vmem:[#allocation7] sm:$0xf]
    %v77 = vld [vmem:[#allocation7 + $0x4] sm:$0xf]
    %v78 = vld [vmem:[#allocation7 + $0x8] sm:$0xf]
    %v79 = vld [vmem:[#allocation7 + $0xc] sm:$0xf]
    %v80 = vld [vmem:[#allocation7 + $0x10] sm:$0xf]
    %v81 = vld [vmem:[#allocation7 + $0x14] sm:$0xf]
    %v82 = vld [vmem:[#allocation7 + $0x18] sm:$0xf]
    %v83 = vld [vmem:[#allocation7 + $0x1c] sm:$0xf]
    %v84 = vld [vmem:[#allocation7 + $0x20] sm:$0xf]
    %v85 = vld [vmem:[#allocation7 + $0x24] sm:$0xf]
    %v86 = vld [vmem:[#allocation7 + $0x28] sm:$0xf]
    %v87 = vld [vmem:[#allocation7 + $0x2c] sm:$0xf]
    %v88 = vld [vmem:[#allocation7 + $0x30] sm:$0xf]
    %v89 = vld [vmem:[#allocation7 + $0x34] sm:$0xf]
    %v90 = vld [vmem:[#allocation7 + $0x38] sm:$0xf]
    %v91 = vld [vmem:[#allocation7 + $0x3c] sm:$0xf]
    %v92 = vpack.c.bf16 %v74, %v74
    %v93 = vld [vmem:[#allocation8] sm:$0xf]
    %v94 = vld [vmem:[#allocation8 + $0x4] sm:$0xf]
    %v95 = vld [vmem:[#allocation8 + $0x8] sm:$0xf]
    %v96 = vld [vmem:[#allocation8 + $0xc] sm:$0xf]
    %v97 = vld [vmem:[#allocation8 + $0x10] sm:$0xf]
    %v98 = vld [vmem:[#allocation8 + $0x14] sm:$0xf]
    %v99 = vld [vmem:[#allocation8 + $0x18] sm:$0xf]
    %v100 = vld [vmem:[#allocation8 + $0x1c] sm:$0xf]
    %v101 = vld [vmem:[#allocation8 + $0x20] sm:$0xf]
    %v102 = vld [vmem:[#allocation8 + $0x24] sm:$0xf]
    %v103 = vld [vmem:[#allocation8 + $0x28] sm:$0xf]
    %v104 = vld [vmem:[#allocation8 + $0x2c] sm:$0xf]
    %v105 = vld [vmem:[#allocation8 + $0x30] sm:$0xf]
    %v106 = vld [vmem:[#allocation8 + $0x34] sm:$0xf]
    %v107 = vld [vmem:[#allocation8 + $0x38] sm:$0xf]
    %v108 = vld [vmem:[#allocation8 + $0x3c] sm:$0xf]
    %v125 = vunpack.c.l.b16 %v93
    %v126 = vunpack.c.l.b16 %v94
    %v127 = vunpack.c.l.b16 %v95
    %v128 = vunpack.c.l.b16 %v96
    %v129 = vunpack.c.l.b16 %v97
    %v130 = vunpack.c.l.b16 %v98
    %v131 = vunpack.c.l.b16 %v99
    %v132 = vunpack.c.l.b16 %v100
    %v133 = vunpack.c.l.b16 %v101
    %v134 = vunpack.c.l.b16 %v102
    %v135 = vunpack.c.l.b16 %v103
    %v136 = vunpack.c.l.b16 %v104
    %v137 = vunpack.c.l.b16 %v105
    %v138 = vunpack.c.l.b16 %v106
    %v139 = vunpack.c.l.b16 %v107
    %v140 = vunpack.c.l.b16 %v108
    %v141 = vpack.c.b16 %v126, %v125
    %v142 = vpack.c.b16 %v128, %v127
    %v143 = vpack.c.b16 %v130, %v129
    %v144 = vpack.c.b16 %v132, %v131
    %v145 = vpack.c.b16 %v134, %v133
    %v146 = vpack.c.b16 %v136, %v135
    %v147 = vpack.c.b16 %v138, %v137
    %v148 = vpack.c.b16 %v140, %v139
    %157 = vmatprep.subr.bf16.mxu0 0
    %158 = vmatpush1.bf16.msra.mxu0 %v141
    %159 = vmatprep.subr.bf16.mxu0 0
    %160 = vmatpush1.bf16.msra.mxu0 %v142
    %161 = vmatprep.subr.bf16.mxu0 0
    %162 = vmatpush1.bf16.msra.mxu0 %v143
    %163 = vmatprep.subr.bf16.mxu0 0
    %164 = vmatpush1.bf16.msra.mxu0 %v144
    %165 = vmatprep.subr.bf16.mxu0 0
    %166 = vmatpush1.bf16.msra.mxu0 %v145
    %167 = vmatprep.subr.bf16.mxu0 0
    %168 = vmatpush1.bf16.msra.mxu0 %v146
    %169 = vmatprep.subr.bf16.mxu0 0
    %170 = vmatpush1.bf16.msra.mxu0 %v147
    %171 = vmatprep.subr.bf16.mxu0 0
    %172 = vmatpush1.bf16.msra.mxu0 %v148
    %173 = vmatprep.subr.bf16.mxu0 0
    %174 = vmatpush1.bf16.msra.mxu0 0
    %175 = vmatprep.subr.bf16.mxu0 0
    %176 = vmatpush1.bf16.msra.mxu0 0
    %177 = vmatprep.subr.bf16.mxu0 0
    %178 = vmatpush1.bf16.msra.mxu0 0
    %179 = vmatprep.subr.bf16.mxu0 0
    %180 = vmatpush1.bf16.msra.mxu0 0
    %181 = vmatprep.subr.bf16.mxu0 0
    %182 = vmatpush1.bf16.msra.mxu0 0
    %183 = vmatprep.subr.bf16.mxu0 0
    %184 = vmatpush1.bf16.msra.mxu0 0
    %185 = vmatprep.subr.bf16.mxu0 0
    %186 = vmatpush1.bf16.msra.mxu0 0
    %187 = vmatprep.subr.bf16.mxu0 0
    %188 = vmatpush1.bf16.msra.mxu0 0
    %189 = vmatprep.mubr.bf16.mxu0 0
    %190 = vmatmul.mubr.bf16.gmra.mrb[0].mxu0 %v92
    %v191 = vpop.f32.mrb[0].mxu0
    %v192 = vadd.f32 0.0, %v191
    %v193 = vpop.f32.mrb[0].mxu0
    %v194 = vpop.f32.mrb[0].mxu0
    %v195 = vpop.f32.mrb[0].mxu0
    %196 = vdwg.mxu0
    %v213 = vunpack.c.l.b16 %v76
    %v214 = vunpack.c.l.b16 %v77
    %v215 = vunpack.c.l.b16 %v78
    %v216 = vunpack.c.l.b16 %v79
    %v217 = vunpack.c.l.b16 %v80
    %v218 = vunpack.c.l.b16 %v81
    %v219 = vunpack.c.l.b16 %v82
    %v220 = vunpack.c.l.b16 %v83
    %v221 = vunpack.c.l.b16 %v84
    %v222 = vunpack.c.l.b16 %v85
    %v223 = vunpack.c.l.b16 %v86
    %v224 = vunpack.c.l.b16 %v87
    %v225 = vunpack.c.l.b16 %v88
    %v226 = vunpack.c.l.b16 %v89
    %v227 = vunpack.c.l.b16 %v90
    %v228 = vunpack.c.l.b16 %v91
    %v229 = vpack.c.b16 %v214, %v213
    %v230 = vpack.c.b16 %v216, %v215
    %v231 = vpack.c.b16 %v218, %v217
    %v232 = vpack.c.b16 %v220, %v219
    %v233 = vpack.c.b16 %v222, %v221
    %v234 = vpack.c.b16 %v224, %v223
    %v235 = vpack.c.b16 %v226, %v225
    %v236 = vpack.c.b16 %v228, %v227
    %245 = vmatprep.subr.bf16.mxu0 0
    %246 = vmatpush1.bf16.msra.mxu0 %v229
    %247 = vmatprep.subr.bf16.mxu0 0
    %248 = vmatpush1.bf16.msra.mxu0 %v230
    %249 = vmatprep.subr.bf16.mxu0 0
    %250 = vmatpush1.bf16.msra.mxu0 %v231
    %251 = vmatprep.subr.bf16.mxu0 0
    %252 = vmatpush1.bf16.msra.mxu0 %v232
    %253 = vmatprep.subr.bf16.mxu0 0
    %254 = vmatpush1.bf16.msra.mxu0 %v233
    %255 = vmatprep.subr.bf16.mxu0 0
    %256 = vmatpush1.bf16.msra.mxu0 %v234
    %257 = vmatprep.subr.bf16.mxu0 0
    %258 = vmatpush1.bf16.msra.mxu0 %v235
    %259 = vmatprep.subr.bf16.mxu0 0
    %260 = vmatpush1.bf16.msra.mxu0 %v236
    %261 = vmatprep.subr.bf16.mxu0 0
    %262 = vmatpush1.bf16.msra.mxu0 0
    %263 = vmatprep.subr.bf16.mxu0 0
    %264 = vmatpush1.bf16.msra.mxu0 0
    %265 = vmatprep.subr.bf16.mxu0 0
    %266 = vmatpush1.bf16.msra.mxu0 0
    %267 = vmatprep.subr.bf16.mxu0 0
    %268 = vmatpush1.bf16.msra.mxu0 0
    %269 = vmatprep.subr.bf16.mxu0 0
    %270 = vmatpush1.bf16.msra.mxu0 0
    %271 = vmatprep.subr.bf16.mxu0 0
    %272 = vmatpush1.bf16.msra.mxu0 0
    %273 = vmatprep.subr.bf16.mxu0 0
    %274 = vmatpush1.bf16.msra.mxu0 0
    %275 = vmatprep.subr.bf16.mxu0 0
    %276 = vmatpush1.bf16.msra.mxu0 0
    %277 = vmatprep.mubr.bf16.mxu0 0
    %278 = vmatmul.mubr.bf16.gmra.mrb[0].mxu0 %v75
    %v279 = vpop.f32.mrb[0].mxu0
    %v280 = vadd.f32 %v192, %v279
    %v281 = vpop.f32.mrb[0].mxu0
    %v282 = vpop.f32.mrb[0].mxu0
    %v283 = vpop.f32.mrb[0].mxu0
    %284 = vdwg.mxu0
    %v285 = vld [vmem:[%s4] sm:$0x1]
    %v287 = vlaneseq
    %v288 = vshrl.u32 %v287, 7
    %v289 = vsub.s32 0, %v288
    %v290 = vrot.slane %v285, %v289
    %v292 = vadd.f32 %v280, %v290
    %v293 = vxor.u32 %v292, 2147483648
    %v294 = vmul.f32 %v293, 1.442695
    %v295 = vpow.pop %v294
    %v296 = vadd.f32 %v295, 1.0
    %v297 = vrcp.pop %v296
    %v298 = vmul.f32 1.0, %v297
    %v299 = vsub.f32 %v73, %v74
    %v300 = vmul.f32 %v298, %v299
    %v301 = vadd.f32 %v74, %v300
    %302 = vst [vmem:[#allocation10] sm:$0xf] %v301
    // Predicated region
    $region38: #{tpu_custom_call.1} parent=1 // pred_check
      _
    $region39: #{tpu_custom_call.1} parent=1 // pred_check_branch
      %304 = sbr.rel (0) target = $region41
    $region40: #{tpu_custom_call.1} parent=1 // pred_region
      %s306 = ssub.s32 64, 64
      %307 = vsyncadd [#allocation4], %s306
      %s309 = sshll.u32 [#allocation10], 4
      %s310 = int_to_ptr.vmem [resolvable:$true] %s309
      %312 = dma.vmem_to_hbm [thread:$0]  %s310, 64, %s5, [#allocation4]
    $region41: #{tpu_custom_call.1} parent=1 // pred_fallthru
      _
    // Predicated region
    $region42: #{tpu_custom_call.1} parent=1 // pred_check
      _
    $region43: #{tpu_custom_call.1} parent=1 // pred_check_branch
      %314 = sbr.rel (0) target = $region45
    $region44: #{tpu_custom_call.1} parent=1 // pred_region
      %315 = dma.done [#allocation4], 64
    $region45: #{tpu_custom_call.1} parent=1 // pred_fallthru
      _
    %316 = vsyncpa [#allocation3], 1
    %317 = vsyncpa [#allocation6], 1
    %318 = vsyncpa [#allocation9], 1
    %319 = vsyncpa [#allocation4], 1

</llo_original>
